<compile_context>
chip_gen: v6e
topology: v6e:2x2x1
jax: 0.10.0
libtpu: 0.0.40
codegen_flags: <defaults>
</compile_context>

<pallas_src>
import jax
import jax.numpy as jnp
from jax.experimental import pallas as pl
from jax.experimental.pallas import tpu as pltpu


def _round_up(x, m):
    return ((x + m - 1) // m) * m


def _make_kernel(hidden, use_layer_norm):
    """Fused  x@W1+b1 -> relu -> @W2+b2 -> (LayerNorm)  on one row tile."""

    def kernel(x_ref, w1_ref, w2_ref, vec_ref, o_ref):
        # x_ref: (TN, F) f32     w1_ref: (F, H) bf16     w2_ref: (H, H) bf16
        # vec_ref: (4, H) f32 rows = [b1, b2, gamma, beta]   o_ref: (TN, H) f32
        x = x_ref[...].astype(jnp.bfloat16)          # cast in-kernel (no wrapper pass)
        b1 = vec_ref[0:1, :]
        b2 = vec_ref[1:2, :]

        h1 = jnp.dot(x, w1_ref[...], preferred_element_type=jnp.float32)
        h1 = jnp.maximum(h1 + b1, 0.0)
        h2 = jnp.dot(h1.astype(jnp.bfloat16), w2_ref[...],
                     preferred_element_type=jnp.float32) + b2

        if not use_layer_norm:
            o_ref[...] = h2.astype(o_ref.dtype)
            return

        gamma = vec_ref[2:3, :]
        beta = vec_ref[3:4, :]
        inv_h = jnp.float32(1.0 / hidden)
        # Fused one-pass LayerNorm statistics: var = E[x^2] - mean^2
        # (guard tiny negative values from cancellation).
        s1 = jnp.sum(h2, axis=-1, keepdims=True)
        s2 = jnp.sum(h2 * h2, axis=-1, keepdims=True)
        mean = s1 * inv_h
        var = jnp.maximum(s2 * inv_h - mean * mean, 0.0)
        normed = (h2 - mean) * jax.lax.rsqrt(var + jnp.float32(1e-5))
        o_ref[...] = (normed * gamma + beta).astype(o_ref.dtype)

    return kernel


def prepare_params(params):
    """One-time (per model) prep: bf16 weights + packed (4, H) vector block.

    Hoisted out of the per-forward path so static weights are not re-read and
    re-written in HBM on every call.
    """
    w1, b1, w2, b2, gamma, beta = params
    vecs = jnp.stack([b1, b2, gamma, beta], axis=0).astype(jnp.float32)  # (4, H)
    return (w1.astype(jnp.bfloat16), w2.astype(jnp.bfloat16), vecs)


def _vmem_budget_bytes():
    """Generation-aware VMEM cap: ~48 MiB on v7x (64 MiB/TC), ~96 MiB on v5e/v6e."""
    try:
        cap = int(pltpu.get_tpu_info().vmem_capacity_bytes)
    except Exception:  # pragma: no cover - conservative fallback (v7x-safe)
        cap = 64 << 20
    return (cap * 3) // 4


def _est_vmem_bytes(tn, F, H):
    return (2 * tn * F * 4          # x tiles (f32, double-buffered)
            + 2 * tn * H * 4        # out tiles (f32, double-buffered)
            + F * H * 2             # W1 (bf16, single-buffered)
            + H * H * 2             # W2 (bf16, single-buffered)
            + 4 * H * 4             # packed b1/b2/gamma/beta
            + 3 * tn * H * 4)       # h1/h2/normed intermediates (rough)


def mlp_input_layer(h, prepared_params, *, use_layer_norm=True, tile_n=1024):
    """h: [N, 1, h_feats] float32.  prepared_params: output of prepare_params.

    Returns [N, hidden] float32.  Wrap in jax.jit in real use to fold the
    (free) reshape into the same program as the kernel.
    """
    w1, w2, vecs = prepared_params
    N = h.shape[0]
    F, H = w1.shape

    x = h.reshape(N, F)  # squeeze(1); contiguous -> no data movement under jit

    budget = _vmem_budget_bytes()
    if N <= 8:
        tile_n_eff = N
    else:
        # At least two grid steps so both v7x TensorCores get work, and the
        # last tile's padding waste for ragged N is minimized.
        tile_n_eff = min(tile_n, max(8, _round_up(pl.cdiv(N, 2), 8)))
        while tile_n_eff > 8 and _est_vmem_bytes(tile_n_eff, F, H) > budget:
            tile_n_eff = max(8, _round_up(tile_n_eff // 2, 8))
    grid = (pl.cdiv(N, tile_n_eff),)
    # TODO(synk): for very large hidden sizes (bf16 W2 = 2*H^2 bytes stops
    # fitting VMEM, H >= ~3072 on v7x), add a K-tiled grid axis over W2 with an
    # f32 VMEM accumulator (pl.when init/finalize, axis marked "arbitrary").

    kernel = _make_kernel(H, use_layer_norm)

    def _call(single_buffer_weights):
        res = {"pipeline_mode": pl.Buffered(1)} if single_buffer_weights else {}
        in_specs = [
            pl.BlockSpec((tile_n_eff, F), lambda i: (i, 0)),          # streaming x
            pl.BlockSpec((F, H), lambda i: (0, 0), **res),            # W1
            pl.BlockSpec((H, H), lambda i: (0, 0), **res),            # W2
            pl.BlockSpec((4, H), lambda i: (0, 0), **res),            # b1/b2/g/beta
        ]
        out_spec = pl.BlockSpec((tile_n_eff, H), lambda i: (i, 0))
        return pl.pallas_call(
            kernel,
            out_shape=jax.ShapeDtypeStruct((N, H), jnp.float32),
            grid_spec=pltpu.PrefetchScalarGridSpec(
                num_scalar_prefetch=0,
                grid=grid,
                in_specs=in_specs,
                out_specs=out_spec),
            compiler_params=pltpu.CompilerParams(
                dimension_semantics=("parallel",),
                vmem_limit_bytes=int(budget)),
        )(x, w1, w2, vecs)

    try:
        # Grid-invariant operands single-buffered: no wasted double-buffer
        # VMEM for W1/W2, which keeps tile_n large even on v7x's 64 MiB/TC.
        return _call(True)
    except Exception:  # pragma: no cover - fallback if pipeline_mode rejected
        return _call(False)


def init_params(key, h_feats, hidden):
    """Deterministic synthetic params (torch Linear-like uniform init)."""
    k1, k2, k3, k4 = jax.random.split(key, 4)
    lim1 = 1.0 / jnp.sqrt(h_feats)
    lim2 = 1.0 / jnp.sqrt(hidden)
    # Weights stored pre-transposed: [in_features, out_features].
    w1 = jax.random.uniform(k1, (h_feats, hidden), jnp.float32, -lim1, lim1)
    b1 = jax.random.uniform(k2, (hidden,), jnp.float32, -lim1, lim1)
    w2 = jax.random.uniform(k3, (hidden, hidden), jnp.float32, -lim2, lim2)
    b2 = jax.random.uniform(k4, (hidden,), jnp.float32, -lim2, lim2)
    gamma = jnp.ones((hidden,), jnp.float32)   # LayerNorm default init
    beta = jnp.zeros((hidden,), jnp.float32)
    return (w1, b1, w2, b2, gamma, beta)


def _reference(h, params, use_layer_norm=True):
    w1, b1, w2, b2, gamma, beta = params
    x = h.reshape(h.shape[0], -1)
    h1 = jnp.maximum(x @ w1 + b1, 0.0)
    h2 = h1 @ w2 + b2
    if not use_layer_norm:
        return h2
    mean = jnp.mean(h2, axis=-1, keepdims=True)
    var = jnp.mean((h2 - mean) ** 2, axis=-1, keepdims=True)
    return (h2 - mean) * jax.lax.rsqrt(var + 1e-5) * gamma + beta


if __name__ == "__main__":
    key = jax.random.PRNGKey(0)
    configs = [
        # (N, h_feats, hidden, use_layer_norm)
        (16, 32, 128, True),     # small baseline shape
        (300, 48, 192, True),    # ragged N/F/H -> partial last tile, non-128 lanes
        (16, 32, 128, False),    # Identity output layer
    ]
    for idx, (N, F, H, use_ln) in enumerate(configs):
        kx, kp, key = jax.random.split(key, 3)
        h = jax.random.normal(kx, (N, 1, F), jnp.float32)
        params = init_params(kp, F, H)
        prepared = prepare_params(params)   # once per model, not per forward

        out = jax.block_until_ready(
            mlp_input_layer(h, prepared, use_layer_norm=use_ln))
        ref = _reference(h, params, use_layer_norm=use_ln)

        assert out.shape == (N, H), f"bad shape in config {idx}: {out.shape}"
        # bf16 MXU operands (f32 accumulation) vs f32 reference -> loosened
        # tolerance relative to an all-f32 implementation.
        assert jnp.allclose(out, ref, atol=5e-2, rtol=5e-2), (
            f"mismatch in config {idx}")

    print("KERNEL_OK")
</pallas_src>

<mosaic_0001>
module attributes {stable_mosaic.version = 11 : i64} {
  func.func @kernel(%arg0: i32, %arg1: memref<8x32xf32, #tpu.memory_space<vmem>>, %arg2: memref<32x128xbf16, #tpu.memory_space<vmem>>, %arg3: memref<128x128xbf16, #tpu.memory_space<vmem>>, %arg4: memref<4x128xf32, #tpu.memory_space<vmem>>, %arg5: memref<8x128xf32, #tpu.memory_space<vmem>>) attributes {dimension_semantics = [#tpu.dimension_semantics<parallel>], iteration_bounds = array<i64: 2>, scalar_prefetch = 0 : i64, scratch_operands = 0 : i64, tpu.core_type = #tpu.core_type<tc>, window_params = [{transform_indices = @transform_0, window_bounds = array<i64: 8, 32>}, {pipeline_mode = #tpu.pipeline_mode<synchronous>, transform_indices = @transform_1, window_bounds = array<i64: 32, 128>}, {pipeline_mode = #tpu.pipeline_mode<synchronous>, transform_indices = @transform_2, window_bounds = array<i64: 128, 128>}, {pipeline_mode = #tpu.pipeline_mode<synchronous>, transform_indices = @transform_3, window_bounds = array<i64: 4, 128>}, {transform_indices = @transform_4, window_bounds = array<i64: 8, 128>}]} {
    %c0 = arith.constant 0 : index
    %c0_0 = arith.constant 0 : index
    %0 = vector.load %arg1[%c0, %c0_0] : memref<8x32xf32, #tpu.memory_space<vmem>>, vector<8x32xf32>
    %1 = arith.truncf %0 : vector<8x32xf32> to vector<8x32xbf16>
    %c0_1 = arith.constant 0 : index
    %c0_2 = arith.constant 0 : index
    %2 = vector.load %arg4[%c0_1, %c0_2] : memref<4x128xf32, #tpu.memory_space<vmem>>, vector<1x128xf32>
    %c1 = arith.constant 1 : index
    %c0_3 = arith.constant 0 : index
    %3 = vector.load %arg4[%c1, %c0_3] : memref<4x128xf32, #tpu.memory_space<vmem>>, vector<1x128xf32>
    %c0_4 = arith.constant 0 : index
    %c0_5 = arith.constant 0 : index
    %4 = vector.load %arg2[%c0_4, %c0_5] : memref<32x128xbf16, #tpu.memory_space<vmem>>, vector<32x128xbf16>
    %cst = arith.constant dense<0.000000e+00> : vector<8x128xf32>
    %5 = tpu.matmul %1, %4, %cst {dimension_numbers = #tpu.dot_dimension_numbers<[1], [0], [0], [1], [0, 0, 1, 1], [], []>} : vector<8x32xbf16>, vector<32x128xbf16>, vector<8x128xf32> -> vector<8x128xf32>
    %6 = vector.broadcast %2 : vector<1x128xf32> to vector<8x128xf32>
    %7 = arith.addf %5, %6 : vector<8x128xf32>
    %cst_6 = arith.constant 0.000000e+00 : f32
    %8 = vector.broadcast %cst_6 : f32 to vector<8x128xf32>
    %9 = arith.maximumf %7, %8 : vector<8x128xf32>
    %10 = arith.truncf %9 : vector<8x128xf32> to vector<8x128xbf16>
    %c0_7 = arith.constant 0 : index
    %c0_8 = arith.constant 0 : index
    %11 = vector.load %arg3[%c0_7, %c0_8] : memref<128x128xbf16, #tpu.memory_space<vmem>>, vector<128x128xbf16>
    %cst_9 = arith.constant dense<0.000000e+00> : vector<8x128xf32>
    %12 = tpu.matmul %10, %11, %cst_9 {dimension_numbers = #tpu.dot_dimension_numbers<[1], [0], [0], [1], [0, 0, 1, 1], [], []>} : vector<8x128xbf16>, vector<128x128xbf16>, vector<8x128xf32> -> vector<8x128xf32>
    %13 = vector.broadcast %3 : vector<1x128xf32> to vector<8x128xf32>
    %14 = arith.addf %12, %13 : vector<8x128xf32>
    %c2 = arith.constant 2 : index
    %c0_10 = arith.constant 0 : index
    %15 = vector.load %arg4[%c2, %c0_10] : memref<4x128xf32, #tpu.memory_space<vmem>>, vector<1x128xf32>
    %c3 = arith.constant 3 : index
    %c0_11 = arith.constant 0 : index
    %16 = vector.load %arg4[%c3, %c0_11] : memref<4x128xf32, #tpu.memory_space<vmem>>, vector<1x128xf32>
    %cst_12 = arith.constant dense<0.000000e+00> : vector<8xf32>
    %17 = vector.multi_reduction <add>, %14, %cst_12 [1] : vector<8x128xf32> to vector<8xf32>
    %18 = vector.shape_cast %17 : vector<8xf32> to vector<8x1xf32>
    %19 = arith.mulf %14, %14 : vector<8x128xf32>
    %cst_13 = arith.constant dense<0.000000e+00> : vector<8xf32>
    %20 = vector.multi_reduction <add>, %19, %cst_13 [1] : vector<8x128xf32> to vector<8xf32>
    %21 = vector.shape_cast %20 : vector<8xf32> to vector<8x1xf32>
    %cst_14 = arith.constant 7.812500e-03 : f32
    %22 = vector.broadcast %cst_14 : f32 to vector<8x1xf32>
    %23 = arith.mulf %18, %22 : vector<8x1xf32>
    %cst_15 = arith.constant 7.812500e-03 : f32
    %24 = vector.broadcast %cst_15 : f32 to vector<8x1xf32>
    %25 = arith.mulf %21, %24 : vector<8x1xf32>
    %26 = arith.mulf %23, %23 : vector<8x1xf32>
    %27 = arith.subf %25, %26 : vector<8x1xf32>
    %cst_16 = arith.constant 0.000000e+00 : f32
    %28 = vector.broadcast %cst_16 : f32 to vector<8x1xf32>
    %29 = arith.maximumf %27, %28 : vector<8x1xf32>
    %30 = vector.broadcast %23 : vector<8x1xf32> to vector<8x128xf32>
    %31 = arith.subf %14, %30 : vector<8x128xf32>
    %cst_17 = arith.constant 9.99999974E-6 : f32
    %32 = vector.broadcast %cst_17 : f32 to vector<8x1xf32>
    %33 = arith.addf %29, %32 : vector<8x1xf32>
    %34 = math.rsqrt %33 : vector<8x1xf32>
    %35 = vector.broadcast %34 : vector<8x1xf32> to vector<8x128xf32>
    %36 = arith.mulf %31, %35 : vector<8x128xf32>
    %37 = vector.broadcast %15 : vector<1x128xf32> to vector<8x128xf32>
    %38 = arith.mulf %36, %37 : vector<8x128xf32>
    %39 = vector.broadcast %16 : vector<1x128xf32> to vector<8x128xf32>
    %40 = arith.addf %38, %39 : vector<8x128xf32>
    %c0_18 = arith.constant 0 : index
    %c0_19 = arith.constant 0 : index
    %41 = vector.load %arg5[%c0_18, %c0_19] : memref<8x128xf32, #tpu.memory_space<vmem>>, vector<8x128xf32>
    tpu.vector_store %arg5[%c0_18, %c0_19], %40 {strides = array<i32>} : memref<8x128xf32, #tpu.memory_space<vmem>>, vector<8x128xf32>,
    return
  }
  func.func @transform_0(%arg0: i32) -> (i32, i32) {
    %c0_i32 = arith.constant 0 : i32
    %c0_i32_0 = arith.constant 0 : i32
    return %arg0, %c0_i32 : i32, i32
  }
  func.func @transform_1(%arg0: i32) -> (i32, i32) {
    %c0_i32 = arith.constant 0 : i32
    %c0_i32_0 = arith.constant 0 : i32
    %c0_i32_1 = arith.constant 0 : i32
    return %c0_i32, %c0_i32_0 : i32, i32
  }
  func.func @transform_2(%arg0: i32) -> (i32, i32) {
    %c0_i32 = arith.constant 0 : i32
    %c0_i32_0 = arith.constant 0 : i32
    %c0_i32_1 = arith.constant 0 : i32
    return %c0_i32, %c0_i32_0 : i32, i32
  }
  func.func @transform_3(%arg0: i32) -> (i32, i32) {
    %c0_i32 = arith.constant 0 : i32
    %c0_i32_0 = arith.constant 0 : i32
    %c0_i32_1 = arith.constant 0 : i32
    return %c0_i32, %c0_i32_0 : i32, i32
  }
  func.func @transform_4(%arg0: i32) -> (i32, i32) {
    %c0_i32 = arith.constant 0 : i32
    %c0_i32_0 = arith.constant 0 : i32
    return %arg0, %c0_i32 : i32, i32
  }
}

module attributes {stable_mosaic.version = 11 : i64} {
  func.func @kernel(%arg0: i32, %arg1: memref<8x32xf32, #tpu.memory_space<vmem>>, %arg2: memref<32x128xbf16, #tpu.memory_space<vmem>>, %arg3: memref<128x128xbf16, #tpu.memory_space<vmem>>, %arg4: memref<4x128xf32, #tpu.memory_space<vmem>>, %arg5: memref<8x128xf32, #tpu.memory_space<vmem>>) attributes {dimension_semantics = [#tpu.dimension_semantics<parallel>], iteration_bounds = array<i64: 2>, scalar_prefetch = 0 : i64, scratch_operands = 0 : i64, tpu.core_type = #tpu.core_type<tc>, window_params = [{transform_indices = @transform_0, window_bounds = array<i64: 8, 32>}, {pipeline_mode = #tpu.pipeline_mode<synchronous>, transform_indices = @transform_1, window_bounds = array<i64: 32, 128>}, {pipeline_mode = #tpu.pipeline_mode<synchronous>, transform_indices = @transform_2, window_bounds = array<i64: 128, 128>}, {pipeline_mode = #tpu.pipeline_mode<synchronous>, transform_indices = @transform_3, window_bounds = array<i64: 4, 128>}, {transform_indices = @transform_4, window_bounds = array<i64: 8, 128>}]} {
    %c0 = arith.constant 0 : index
    %c0_0 = arith.constant 0 : index
    %0 = vector.load %arg1[%c0, %c0_0] : memref<8x32xf32, #tpu.memory_space<vmem>>, vector<8x32xf32>
    %1 = arith.truncf %0 : vector<8x32xf32> to vector<8x32xbf16>
    %c0_1 = arith.constant 0 : index
    %c0_2 = arith.constant 0 : index
    %2 = vector.load %arg4[%c0_1, %c0_2] : memref<4x128xf32, #tpu.memory_space<vmem>>, vector<1x128xf32>
    %c1 = arith.constant 1 : index
    %c0_3 = arith.constant 0 : index
    %3 = vector.load %arg4[%c1, %c0_3] : memref<4x128xf32, #tpu.memory_space<vmem>>, vector<1x128xf32>
    %c0_4 = arith.constant 0 : index
    %c0_5 = arith.constant 0 : index
    %4 = vector.load %arg2[%c0_4, %c0_5] : memref<32x128xbf16, #tpu.memory_space<vmem>>, vector<32x128xbf16>
    %cst = arith.constant dense<0.000000e+00> : vector<8x128xf32>
    %5 = tpu.matmul %1, %4, %cst {dimension_numbers = #tpu.dot_dimension_numbers<[1], [0], [0], [1], [0, 0, 1, 1], [], []>} : vector<8x32xbf16>, vector<32x128xbf16>, vector<8x128xf32> -> vector<8x128xf32>
    %6 = vector.broadcast %2 : vector<1x128xf32> to vector<8x128xf32>
    %7 = arith.addf %5, %6 : vector<8x128xf32>
    %cst_6 = arith.constant 0.000000e+00 : f32
    %8 = vector.broadcast %cst_6 : f32 to vector<8x128xf32>
    %9 = arith.maximumf %7, %8 : vector<8x128xf32>
    %10 = arith.truncf %9 : vector<8x128xf32> to vector<8x128xbf16>
    %c0_7 = arith.constant 0 : index
    %c0_8 = arith.constant 0 : index
    %11 = vector.load %arg3[%c0_7, %c0_8] : memref<128x128xbf16, #tpu.memory_space<vmem>>, vector<128x128xbf16>
    %cst_9 = arith.constant dense<0.000000e+00> : vector<8x128xf32>
    %12 = tpu.matmul %10, %11, %cst_9 {dimension_numbers = #tpu.dot_dimension_numbers<[1], [0], [0], [1], [0, 0, 1, 1], [], []>} : vector<8x128xbf16>, vector<128x128xbf16>, vector<8x128xf32> -> vector<8x128xf32>
    %13 = vector.broadcast %3 : vector<1x128xf32> to vector<8x128xf32>
    %14 = arith.addf %12, %13 : vector<8x128xf32>
    %c2 = arith.constant 2 : index
    %c0_10 = arith.constant 0 : index
    %15 = vector.load %arg4[%c2, %c0_10] : memref<4x128xf32, #tpu.memory_space<vmem>>, vector<1x128xf32>
    %c3 = arith.constant 3 : index
    %c0_11 = arith.constant 0 : index
    %16 = vector.load %arg4[%c3, %c0_11] : memref<4x128xf32, #tpu.memory_space<vmem>>, vector<1x128xf32>
    %cst_12 = arith.constant dense<0.000000e+00> : vector<8xf32>
    %17 = vector.multi_reduction <add>, %14, %cst_12 [1] : vector<8x128xf32> to vector<8xf32>
    %18 = vector.shape_cast %17 : vector<8xf32> to vector<8x1xf32>
    %19 = arith.mulf %14, %14 : vector<8x128xf32>
    %cst_13 = arith.constant dense<0.000000e+00> : vector<8xf32>
    %20 = vector.multi_reduction <add>, %19, %cst_13 [1] : vector<8x128xf32> to vector<8xf32>
    %21 = vector.shape_cast %20 : vector<8xf32> to vector<8x1xf32>
    %cst_14 = arith.constant 7.812500e-03 : f32
    %22 = vector.broadcast %cst_14 : f32 to vector<8x1xf32>
    %23 = arith.mulf %18, %22 : vector<8x1xf32>
    %cst_15 = arith.constant 7.812500e-03 : f32
    %24 = vector.broadcast %cst_15 : f32 to vector<8x1xf32>
    %25 = arith.mulf %21, %24 : vector<8x1xf32>
    %26 = arith.mulf %23, %23 : vector<8x1xf32>
    %27 = arith.subf %25, %26 : vector<8x1xf32>
    %cst_16 = arith.constant 0.000000e+00 : f32
    %28 = vector.broadcast %cst_16 : f32 to vector<8x1xf32>
    %29 = arith.maximumf %27, %28 : vector<8x1xf32>
    %30 = vector.broadcast %23 : vector<8x1xf32> to vector<8x128xf32>
    %31 = arith.subf %14, %30 : vector<8x128xf32>
    %cst_17 = arith.constant 9.99999974E-6 : f32
    %32 = vector.broadcast %cst_17 : f32 to vector<8x1xf32>
    %33 = arith.addf %29, %32 : vector<8x1xf32>
    %34 = math.rsqrt %33 : vector<8x1xf32>
    %35 = vector.broadcast %34 : vector<8x1xf32> to vector<8x128xf32>
    %36 = arith.mulf %31, %35 : vector<8x128xf32>
    %37 = vector.broadcast %15 : vector<1x128xf32> to vector<8x128xf32>
    %38 = arith.mulf %36, %37 : vector<8x128xf32>
    %39 = vector.broadcast %16 : vector<1x128xf32> to vector<8x128xf32>
    %40 = arith.addf %38, %39 : vector<8x128xf32>
    %c0_18 = arith.constant 0 : index
    %c0_19 = arith.constant 0 : index
    %41 = vector.load %arg5[%c0_18, %c0_19] : memref<8x128xf32, #tpu.memory_space<vmem>>, vector<8x128xf32>
    tpu.vector_store %arg5[%c0_18, %c0_19], %40 {strides = array<i32>} : memref<8x128xf32, #tpu.memory_space<vmem>>, vector<8x128xf32>,
    return
  }
  func.func @transform_0(%arg0: i32) -> (i32, i32) {
    %c0_i32 = arith.constant 0 : i32
    %c0_i32_0 = arith.constant 0 : i32
    return %arg0, %c0_i32 : i32, i32
  }
  func.func @transform_1(%arg0: i32) -> (i32, i32) {
    %c0_i32 = arith.constant 0 : i32
    %c0_i32_0 = arith.constant 0 : i32
    %c0_i32_1 = arith.constant 0 : i32
    return %c0_i32, %c0_i32_0 : i32, i32
  }
  func.func @transform_2(%arg0: i32) -> (i32, i32) {
    %c0_i32 = arith.constant 0 : i32
    %c0_i32_0 = arith.constant 0 : i32
    %c0_i32_1 = arith.constant 0 : i32
    return %c0_i32, %c0_i32_0 : i32, i32
  }
  func.func @transform_3(%arg0: i32) -> (i32, i32) {
    %c0_i32 = arith.constant 0 : i32
    %c0_i32_0 = arith.constant 0 : i32
    %c0_i32_1 = arith.constant 0 : i32
    return %c0_i32, %c0_i32_0 : i32, i32
  }
  func.func @transform_4(%arg0: i32) -> (i32, i32) {
    %c0_i32 = arith.constant 0 : i32
    %c0_i32_0 = arith.constant 0 : i32
    return %arg0, %c0_i32 : i32, i32
  }
}

</mosaic_0001>

<llo_original>
// kernel: tpu_custom_call.1
$region0: #{tpu_custom_call.1}
  #allocation0 [shape = 'u32[]', space=smem, size = 0x4, offset = 0x4, fixed_abs, tag = 'smem constant byte address 0x4 - core index']
  #allocation1 [shape = 'u32[144,128]{1,0:T(1,128)}', space=vmem, size = 0x12000, scoped, tag = 'internal scratch']
  %s0 = inlined_call_operand.hbm [shape: f32[16,32], index: 0, kind: input, shape index: {}]
  %s1 = inlined_call_operand.hbm [shape: bf16[32,128], index: 1, kind: input, shape index: {}]
  %s2 = inlined_call_operand.hbm [shape: bf16[128,128], index: 2, kind: input, shape index: {}]
  %s3 = inlined_call_operand.vmem [shape: f32[4,128], index: 3, kind: input, shape index: {}]
  %s4 = inlined_call_operand.hbm [shape: f32[16,128], index: 4, kind: output, shape index: {}]
  %s5 = sld [smem:[#allocation0]]
  $region61: #{tpu_custom_call.1} parent=0
    _
  %s7 = ssub.s32 1, %s5
  %s8 = scalar_select 0, %s7, %s5
  $region1: #{tpu_custom_call.1} parent=0
    #allocation2 [shape = 'u8[8192]{0}', space=vmem, size = 0x2000, scoped, tag = 'input window, operand 0']
    #allocation3 [shape = 's32[2]{0}', space=sflag, size = 0x8, scoped, tag = 'scoped memory for tpu_custom_call.1']
    #allocation4 [shape = 's32[2]{0}', space=sflag, size = 0x8, scoped, tag = 'scoped memory for tpu_custom_call.1']
    #allocation5 [shape = 'u8[8192]{0}', space=vmem, size = 0x2000, scoped, tag = 'input window, operand 1, single buffered']
    #allocation6 [shape = 's32[1]{0}', space=sflag, size = 0x4, scoped, tag = 'scoped memory for tpu_custom_call.1']
    #allocation7 [shape = 'u8[32768]{0}', space=vmem, size = 0x8000, scoped, tag = 'input window, operand 2, single buffered']
    #allocation8 [shape = 'u8[8192]{0}', space=vmem, size = 0x2000, scoped, tag = 'output window, operand 0']
    %9 = vsyncpa [#allocation3], 0
    %s10 = scalar_lea.sflag [#allocation3], 1
    %11 = vsyncpa %s10, 0
    %12 = vsyncpa [#allocation6], 0
    %13 = vsyncpa [#allocation4], 0
    %s14 = scalar_lea.sflag [#allocation4], 1
    %15 = vsyncpa %s14, 0
    loop: start=0, step=1, limit=4
    $region2: #{tpu_custom_call.1} parent=1 // loop_pre_header
      _
    $region3: #{tpu_custom_call.1} parent=1 // loop_header
      %s17 = sphi 0, %s21
      %p18 = scmp.ge.s32.totalorder %s17, 4
      %s27 = sphi 0, %s29
      %s30 = sphi 0, %s27
      %s31 = sphi 0, %s30
      %s47 = sphi 0, %s31
      %s51 = sphi 0, %s51
      %s53 = sphi 0, %s51
      %s54 = sphi 0, %s53
      %s68 = sphi 0, %s54
      %s72 = sphi 0, %s72
      %s74 = sphi 0, %s72
      %s75 = sphi 0, %s74
      %s89 = sphi 0, %s75
      %s93 = sphi 0, %s93
      %s95 = sphi 0, %s93
      %s96 = sphi 0, %s95
      %s110 = sphi 0, %s96
      %s116 = sphi 0, %s118
      %s119 = sphi 0, %s116
      %s120 = sphi 0, %s119
      %s136 = sphi 0, %s120
    $region4: #{tpu_custom_call.1} parent=1 // loop_header_branch
      %20 = sbr.rel (%p18) target = $region8
    $region5: #{tpu_custom_call.1} parent=1 // loop_body
      %s22 = ssub.s32 %s17, 1
      %s23 = ssub.s32 %s17, 2
      %s24 = sadd.s32 %s17, 1
      %s25 = ssub.s32 %s17, %s24
      %p26 = scmp.eq.s32.totalorder %s25, 0
      %s28 = sadd.s32 %s27, 1
      %s29 = scalar_select %p26, %s27, %s28
      %p32 = pneg %p26
      %p33 = scmp.eq.s32.totalorder %s17, 1
      %p34 = por %p32, %p33
      %p35 = scmp.ne.s32.totalorder %s27, %s30
      %p36 = scmp.eq.s32.totalorder %s17, 0
      %p37 = por %p35, %p36
      %p38 = scmp.ne.s32.totalorder %s27, %s30
      %p39 = scmp.eq.s32.totalorder %s22, 1
      %p40 = por %p38, %p39
      %p41 = scmp.ne.s32.totalorder %s30, %s31
      %p42 = scmp.eq.s32.totalorder %s22, 0
      %p43 = por %p41, %p42
      %p44 = scmp.ne.s32.totalorder %s30, %s31
      %p45 = scmp.eq.s32.totalorder %s23, 1
      %p46 = por %p44, %p45
      %p48 = scmp.ne.s32.totalorder %s31, %s47
      %p49 = scmp.eq.s32.totalorder %s23, 0
      %p50 = por %p48, %p49
      %s52 = sadd.s32 %s51, 1
      %p55 = scmp.eq.s32.totalorder %s17, 1
      %p56 = scmp.ne.s32.totalorder %s51, %s53
      %p57 = scmp.eq.s32.totalorder %s17, 0
      %p58 = por %p56, %p57
      %p59 = scmp.ne.s32.totalorder %s51, %s53
      %p60 = scmp.eq.s32.totalorder %s22, 1
      %p61 = por %p59, %p60
      %p62 = scmp.ne.s32.totalorder %s53, %s54
      %p63 = scmp.eq.s32.totalorder %s22, 0
      %p64 = por %p62, %p63
      %p65 = scmp.ne.s32.totalorder %s53, %s54
      %p66 = scmp.eq.s32.totalorder %s23, 1
      %p67 = por %p65, %p66
      %p69 = scmp.ne.s32.totalorder %s54, %s68
      %p70 = scmp.eq.s32.totalorder %s23, 0
      %p71 = por %p69, %p70
      %s73 = sadd.s32 %s72, 1
      %p76 = scmp.eq.s32.totalorder %s17, 1
      %p77 = scmp.ne.s32.totalorder %s72, %s74
      %p78 = scmp.eq.s32.totalorder %s17, 0
      %p79 = por %p77, %p78
      %p80 = scmp.ne.s32.totalorder %s72, %s74
      %p81 = scmp.eq.s32.totalorder %s22, 1
      %p82 = por %p80, %p81
      %p83 = scmp.ne.s32.totalorder %s74, %s75
      %p84 = scmp.eq.s32.totalorder %s22, 0
      %p85 = por %p83, %p84
      %p86 = scmp.ne.s32.totalorder %s74, %s75
      %p87 = scmp.eq.s32.totalorder %s23, 1
      %p88 = por %p86, %p87
      %p90 = scmp.ne.s32.totalorder %s75, %s89
      %p91 = scmp.eq.s32.totalorder %s23, 0
      %p92 = por %p90, %p91
      %s94 = sadd.s32 %s93, 1
      %p97 = scmp.eq.s32.totalorder %s17, 1
      %p98 = scmp.ne.s32.totalorder %s93, %s95
      %p99 = scmp.eq.s32.totalorder %s17, 0
      %p100 = por %p98, %p99
      %p101 = scmp.ne.s32.totalorder %s93, %s95
      %p102 = scmp.eq.s32.totalorder %s22, 1
      %p103 = por %p101, %p102
      %p104 = scmp.ne.s32.totalorder %s95, %s96
      %p105 = scmp.eq.s32.totalorder %s22, 0
      %p106 = por %p104, %p105
      %p107 = scmp.ne.s32.totalorder %s95, %s96
      %p108 = scmp.eq.s32.totalorder %s23, 1
      %p109 = por %p107, %p108
      %p111 = scmp.ne.s32.totalorder %s96, %s110
      %p112 = scmp.eq.s32.totalorder %s23, 0
      %p113 = por %p111, %p112
      %s114 = ssub.s32 %s17, %s24
      %p115 = scmp.eq.s32.totalorder %s114, 0
      %s117 = sadd.s32 %s116, 1
      %s118 = scalar_select %p115, %s116, %s117
      %p121 = pneg %p115
      %p122 = scmp.eq.s32.totalorder %s17, 1
      %p123 = por %p121, %p122
      %p124 = scmp.ne.s32.totalorder %s116, %s119
      %p125 = scmp.eq.s32.totalorder %s17, 0
      %p126 = por %p124, %p125
      %p127 = scmp.ne.s32.totalorder %s116, %s119
      %p128 = scmp.eq.s32.totalorder %s22, 1
      %p129 = por %p127, %p128
      %p130 = scmp.ne.s32.totalorder %s119, %s120
      %p131 = scmp.eq.s32.totalorder %s22, 0
      %p132 = por %p130, %p131
      %p133 = scmp.ne.s32.totalorder %s119, %s120
      %p134 = scmp.eq.s32.totalorder %s23, 1
      %p135 = por %p133, %p134
      %p137 = scmp.ne.s32.totalorder %s120, %s136
      %p138 = scmp.eq.s32.totalorder %s23, 0
      %p139 = por %p137, %p138
      %p140 = scmp.le.s32.totalorder 1, %s17
      %p141 = scmp.lt.s32.totalorder %s17, 3
      %p142 = pnand %p140, %p141
      %p143 = pneg %p142
      // Predicated region
      $region9: #{tpu_custom_call.1} parent=5 // pred_check
        _
      $region10: #{tpu_custom_call.1} parent=5 // pred_check_branch
        %145 = sbr.rel (%p142) target = $region12
      $region11: #{tpu_custom_call.1} parent=5 // pred_region
        %s146 = ssub.s32 %s17, 1
        // Predicated region
        $region13: #{tpu_custom_call.1} parent=11 // pred_check
          %p147 = pneg %p64
        $region14: #{tpu_custom_call.1} parent=11 // pred_check_branch
          %149 = sbr.rel (%p147) target = $region16
        $region15: #{tpu_custom_call.1} parent=11 // pred_region
          %s151 = ssub.s32 256, 256
          %152 = vsyncadd [#allocation6], %s151
          %s153 = sshll.u32 [#allocation5], 4
          %s154 = int_to_ptr.vmem [resolvable:$true] %s153
          %159 = dma.hbm_to_vmem [thread:$0]  %s1, 256, %s154, [#allocation6], 64, 64, 4
        $region16: #{tpu_custom_call.1} parent=11 // pred_fallthru
          _
        // Predicated region
        $region17: #{tpu_custom_call.1} parent=11 // pred_check
          %p160 = pneg %p85
        $region18: #{tpu_custom_call.1} parent=11 // pred_check_branch
          %162 = sbr.rel (%p160) target = $region20
        $region19: #{tpu_custom_call.1} parent=11 // pred_region
          %s164 = ssub.s32 1024, 1024
          %165 = vsyncadd [#allocation6], %s164
          %s166 = sshll.u32 [#allocation7], 4
          %s167 = int_to_ptr.vmem [resolvable:$true] %s166
          %172 = dma.hbm_to_vmem [thread:$0]  %s2, 1024, %s167, [#allocation6], 64, 64, 4
        $region20: #{tpu_custom_call.1} parent=11 // pred_fallthru
          _
        // Predicated region
        $region21: #{tpu_custom_call.1} parent=11 // pred_check
          %p173 = pneg %p106
        $region22: #{tpu_custom_call.1} parent=11 // pred_check_branch
          %175 = sbr.rel (%p173) target = $region24
        $region23: #{tpu_custom_call.1} parent=11 // pred_region
          _
        $region24: #{tpu_custom_call.1} parent=11 // pred_fallthru
          _
      $region12: #{tpu_custom_call.1} parent=5 // pred_fallthru
        _
      %p176 = scmp.lt.s32.totalorder %s17, 2
      // Predicated region
      $region25: #{tpu_custom_call.1} parent=5 // pred_check
        %p177 = pneg %p176
      $region26: #{tpu_custom_call.1} parent=5 // pred_check_branch
        %179 = sbr.rel (%p177) target = $region28
      $region27: #{tpu_custom_call.1} parent=5 // pred_region
        // Predicated region
        $region29: #{tpu_custom_call.1} parent=27 // pred_check
          %p180 = pneg %p37
        $region30: #{tpu_custom_call.1} parent=27 // pred_check_branch
          %182 = sbr.rel (%p180) target = $region32
        $region31: #{tpu_custom_call.1} parent=27 // pred_region
          %s183 = sand.u32 %s27, 1
          %s184 = scalar_lea.sflag [#allocation3], %s183
          %s185 = sand.u32 %s27, 1
          %s186 = smul.addr %s185, 8
          %s187 = scalar_lea.vmem [#allocation2], %s186
          %s189 = ssub.s32 128, 128
          %190 = vsyncadd %s184, %s189
          %s191 = smul.addr %s17, 128
          %s192 = scalar_lea.hbm %s0, %s191
          %s194 = sshll.u32 %s187, 4
          %s195 = int_to_ptr.vmem [resolvable:$true] %s194
          %197 = dma.hbm_to_vmem [thread:$0]  %s192, 128, %s195, %s184
        $region32: #{tpu_custom_call.1} parent=27 // pred_fallthru
          _
      $region28: #{tpu_custom_call.1} parent=5 // pred_fallthru
        _
      %p198 = scmp.le.s32.totalorder 1, %s17
      %p199 = scmp.lt.s32.totalorder %s17, 3
      %p200 = pnand %p198, %p199
      %p201 = pneg %p200
      // Predicated region
      $region33: #{tpu_custom_call.1} parent=5 // pred_check
        _
      $region34: #{tpu_custom_call.1} parent=5 // pred_check_branch
        %203 = sbr.rel (%p200) target = $region36
      $region35: #{tpu_custom_call.1} parent=5 // pred_region
        %s204 = ssub.s32 %s17, 1
        %s205 = sand.u32 %s30, 1
        %s206 = scalar_lea.sflag [#allocation3], %s205
        %s207 = sand.u32 %s30, 1
        %s208 = smul.addr %s207, 8
        %s209 = scalar_lea.vmem [#allocation2], %s208
        // Predicated region
        $region37: #{tpu_custom_call.1} parent=35 // pred_check
          %p210 = pneg %p43
        $region38: #{tpu_custom_call.1} parent=35 // pred_check_branch
          %212 = sbr.rel (%p210) target = $region40
        $region39: #{tpu_custom_call.1} parent=35 // pred_region
          %213 = dma.done %s206, 128
        $region40: #{tpu_custom_call.1} parent=35 // pred_fallthru
          _
        // Predicated region
        $region41: #{tpu_custom_call.1} parent=35 // pred_check
          %p214 = pneg %p64
        $region42: #{tpu_custom_call.1} parent=35 // pred_check_branch
          %216 = sbr.rel (%p214) target = $region44
        $region43: #{tpu_custom_call.1} parent=35 // pred_region
          %217 = dma.done [#allocation6], 256
        $region44: #{tpu_custom_call.1} parent=35 // pred_fallthru
          _
        // Predicated region
        $region45: #{tpu_custom_call.1} parent=35 // pred_check
          %p218 = pneg %p85
        $region46: #{tpu_custom_call.1} parent=35 // pred_check_branch
          %220 = sbr.rel (%p218) target = $region48
        $region47: #{tpu_custom_call.1} parent=35 // pred_region
          %221 = dma.done [#allocation6], 1024
        $region48: #{tpu_custom_call.1} parent=35 // pred_fallthru
          _
        %s222 = sand.u32 %s30, 1
        %s223 = scalar_lea.sflag [#allocation3], %s222
        %s224 = sand.u32 %s30, 1
        %s225 = smul.addr %s224, 8
        %s226 = scalar_lea.vmem [#allocation2], %s225
        %p227 = pneg %p43
        %p228 = pneg %p40
        %p229 = pneg %p64
        %p230 = pneg %p61
        %p231 = pneg %p85
        %p232 = pneg %p82
        %p233 = pneg %p106
        %p234 = pneg %p103
        %p235 = pneg %p132
        %p236 = pneg %p129
        %s237 = sand.u32 %s119, 1
        %s238 = scalar_lea.sflag [#allocation4], %s237
        %s239 = sand.u32 %s119, 1
        %s240 = smul.addr %s239, 8
        %s241 = scalar_lea.vmem [#allocation8], %s240
        %v243 = vld [vmem:[%s209] sm:$0xff]
        %v244 = vpack.c.bf16 %v243, %v243
        %v245 = vld [vmem:[%s3] sm:$0x1]
        %v246 = vld [vmem:[%s3 + $0x1] sm:$0x1]
        %v247 = vld [vmem:[#allocation5] sm:$0xf]
        %v248 = vld [vmem:[#allocation5 + $0x4] sm:$0xf]
        %v249 = vld [vmem:[#allocation5 + $0x8] sm:$0xf]
        %v250 = vld [vmem:[#allocation5 + $0xc] sm:$0xf]
        %v251 = vlaneseq
        %v252 = vshrl.u32 %v251, 7
        %v253 = vsub.s32 0, %v252
        %v254 = vrot.slane %v245, %v253
        %v259 = vunpack.c.l.b16 %v247
        %v260 = vunpack.c.l.b16 %v248
        %v261 = vunpack.c.l.b16 %v249
        %v262 = vunpack.c.l.b16 %v250
        %v263 = vpack.c.b16 %v260, %v259
        %v264 = vpack.c.b16 %v262, %v261
        %vm267 = vcmask 261120
        %v269 = vsel %vm267, %v244, 0
        %271 = vmatprep.subr.bf16.mxu0 0
        %272 = vmatpush1.bf16.msra.mxu0 0
        %273 = vmatprep.subr.bf16.mxu0 0
        %274 = vmatpush1.bf16.msra.mxu0 0
        %275 = vmatprep.subr.bf16.mxu0 0
        %276 = vmatpush1.bf16.msra.mxu0 0
        %277 = vmatprep.subr.bf16.mxu0 0
        %278 = vmatpush1.bf16.msra.mxu0 0
        %279 = vmatprep.subr.bf16.mxu0 0
        %280 = vmatpush1.bf16.msra.mxu0 0
        %281 = vmatprep.subr.bf16.mxu0 0
        %282 = vmatpush1.bf16.msra.mxu0 0
        %283 = vmatprep.subr.bf16.mxu0 0
        %284 = vmatpush1.bf16.msra.mxu0 %v264
        %285 = vmatprep.subr.bf16.mxu0 0
        %286 = vmatpush1.bf16.msra.mxu0 %v263
        %287 = vmatprep.subr.bf16.mxu0 0
        %288 = vmatpush2.bf16.msra.mxu0 0
        %289 = vmatprep.subr.bf16.mxu0 0
        %290 = vmatpush2.bf16.msra.mxu0 0
        %291 = vmatprep.subr.bf16.mxu0 0
        %292 = vmatpush2.bf16.msra.mxu0 0
        %293 = vmatprep.subr.bf16.mxu0 0
        %294 = vmatpush2.bf16.msra.mxu0 0
        %295 = vmatprep.subr.bf16.mxu0 0
        %296 = vmatpush2.bf16.msra.mxu0 0
        %297 = vmatprep.subr.bf16.mxu0 0
        %298 = vmatpush2.bf16.msra.mxu0 0
        %299 = vmatprep.subr.bf16.mxu0 0
        %300 = vmatpush2.bf16.msra.mxu0 0
        %301 = vmatprep.subr.bf16.mxu0 0
        %302 = vmatpush2.bf16.msra.mxu0 0
        %303 = vmatprep.mubr.bf16.mxu0 0
        %304 = vmatmul.mubr.bf16.gmra.mxu0 %v269
        %v305 = vpop.f32.mrf.mxu0
        %v306 = vadd.f32 %v254, %v305
        %v307 = vpop.f32.mrf.mxu0
        %v308 = vpop.f32.mrf.mxu0
        %v309 = vpop.f32.mrf.mxu0
        %310 = vdwg.mxu0
        %v311 = vmax.f32 %v306, 0.0
        %v312 = vpack.c.bf16 %v311, %v311
        %v313 = vld [vmem:[#allocation7] sm:$0xf]
        %v314 = vld [vmem:[#allocation7 + $0x4] sm:$0xf]
        %v315 = vld [vmem:[#allocation7 + $0x8] sm:$0xf]
        %v316 = vld [vmem:[#allocation7 + $0xc] sm:$0xf]
        %v317 = vld [vmem:[#allocation7 + $0x10] sm:$0xf]
        %v318 = vld [vmem:[#allocation7 + $0x14] sm:$0xf]
        %v319 = vld [vmem:[#allocation7 + $0x18] sm:$0xf]
        %v320 = vld [vmem:[#allocation7 + $0x1c] sm:$0xf]
        %v321 = vld [vmem:[#allocation7 + $0x20] sm:$0xf]
        %v322 = vld [vmem:[#allocation7 + $0x24] sm:$0xf]
        %v323 = vld [vmem:[#allocation7 + $0x28] sm:$0xf]
        %v324 = vld [vmem:[#allocation7 + $0x2c] sm:$0xf]
        %v325 = vld [vmem:[#allocation7 + $0x30] sm:$0xf]
        %v326 = vld [vmem:[#allocation7 + $0x34] sm:$0xf]
        %v327 = vld [vmem:[#allocation7 + $0x38] sm:$0xf]
        %v328 = vld [vmem:[#allocation7 + $0x3c] sm:$0xf]
        %v329 = vlaneseq
        %v330 = vshrl.u32 %v329, 7
        %v331 = vsub.s32 0, %v330
        %v332 = vrot.slane %v246, %v331
        %v349 = vunpack.c.l.b16 %v313
        %v350 = vunpack.c.l.b16 %v314
        %v351 = vunpack.c.l.b16 %v315
        %v352 = vunpack.c.l.b16 %v316
        %v353 = vunpack.c.l.b16 %v317
        %v354 = vunpack.c.l.b16 %v318
        %v355 = vunpack.c.l.b16 %v319
        %v356 = vunpack.c.l.b16 %v320
        %v357 = vunpack.c.l.b16 %v321
        %v358 = vunpack.c.l.b16 %v322
        %v359 = vunpack.c.l.b16 %v323
        %v360 = vunpack.c.l.b16 %v324
        %v361 = vunpack.c.l.b16 %v325
        %v362 = vunpack.c.l.b16 %v326
        %v363 = vunpack.c.l.b16 %v327
        %v364 = vunpack.c.l.b16 %v328
        %v365 = vpack.c.b16 %v350, %v349
        %v366 = vpack.c.b16 %v352, %v351
        %v367 = vpack.c.b16 %v354, %v353
        %v368 = vpack.c.b16 %v356, %v355
        %v369 = vpack.c.b16 %v358, %v357
        %v370 = vpack.c.b16 %v360, %v359
        %v371 = vpack.c.b16 %v362, %v361
        %v372 = vpack.c.b16 %v364, %v363
        %381 = vmatprep.subr.bf16.mxu0 0
        %382 = vmatpush1.bf16.msra.mxu0 %v372
        %383 = vmatprep.subr.bf16.mxu0 0
        %384 = vmatpush1.bf16.msra.mxu0 %v371
        %385 = vmatprep.subr.bf16.mxu0 0
        %386 = vmatpush1.bf16.msra.mxu0 %v370
        %387 = vmatprep.subr.bf16.mxu0 0
        %388 = vmatpush1.bf16.msra.mxu0 %v369
        %389 = vmatprep.subr.bf16.mxu0 0
        %390 = vmatpush1.bf16.msra.mxu0 %v368
        %391 = vmatprep.subr.bf16.mxu0 0
        %392 = vmatpush1.bf16.msra.mxu0 %v367
        %393 = vmatprep.subr.bf16.mxu0 0
        %394 = vmatpush1.bf16.msra.mxu0 %v366
        %395 = vmatprep.subr.bf16.mxu0 0
        %396 = vmatpush1.bf16.msra.mxu0 %v365
        %397 = vmatprep.subr.bf16.mxu0 0
        %398 = vmatpush2.bf16.msra.mxu0 0
        %399 = vmatprep.subr.bf16.mxu0 0
        %400 = vmatpush2.bf16.msra.mxu0 0
        %401 = vmatprep.subr.bf16.mxu0 0
        %402 = vmatpush2.bf16.msra.mxu0 0
        %403 = vmatprep.subr.bf16.mxu0 0
        %404 = vmatpush2.bf16.msra.mxu0 0
        %405 = vmatprep.subr.bf16.mxu0 0
        %406 = vmatpush2.bf16.msra.mxu0 0
        %407 = vmatprep.subr.bf16.mxu0 0
        %408 = vmatpush2.bf16.msra.mxu0 0
        %409 = vmatprep.subr.bf16.mxu0 0
        %410 = vmatpush2.bf16.msra.mxu0 0
        %411 = vmatprep.subr.bf16.mxu0 0
        %412 = vmatpush2.bf16.msra.mxu0 0
        %413 = vmatprep.mubr.bf16.mxu0 0
        %414 = vmatmul.mubr.bf16.gmra.mxu0 %v312
        %v415 = vpop.f32.mrf.mxu0
        %v416 = vadd.f32 %v332, %v415
        %v417 = vpop.f32.mrf.mxu0
        %v418 = vpop.f32.mrf.mxu0
        %v419 = vpop.f32.mrf.mxu0
        %420 = vdwg.mxu0
        %v421 = vld [vmem:[%s3 + $0x2] sm:$0x1]
        %v422 = vld [vmem:[%s3 + $0x3] sm:$0x1]
        %423 = vadd.xlane.f32.xlu0 %v416
        %v424 = vpop.xlane.xlu0 %423
        %v425 = vmul.f32 %v416, %v416
        %426 = vadd.xlane.f32.xlu0 %v425
        %v427 = vpop.xlane.xlu0 %426
        %v428 = vmul.f32 %v424, 0.0078125
        %v429 = vmul.f32 %v427, 0.0078125
        %v430 = vmul.f32 %v428, %v428
        %v431 = vsub.f32 %v429, %v430
        %v432 = vmax.f32 %v431, 0.0
        %v433 = vsub.f32 %v416, %v428
        %v434 = vadd.f32 %v432, 1e-05
        %v435 = vrsqrt.pop %v434
        %v436 = vmul.f32 %v433, %v435
        %v437 = vlaneseq
        %v438 = vshrl.u32 %v437, 7
        %v439 = vsub.s32 0, %v438
        %v440 = vrot.slane %v421, %v439
        %v441 = vmul.f32 %v436, %v440
        %v442 = vlaneseq
        %v443 = vshrl.u32 %v442, 7
        %v444 = vsub.s32 0, %v443
        %v445 = vrot.slane %v422, %v444
        %v446 = vadd.f32 %v441, %v445
        %447 = vst [vmem:[%s241] sm:$0xff] %v446
        %s448 = sand.u32 %s119, 1
        %s449 = scalar_lea.sflag [#allocation4], %s448
        %s450 = sand.u32 %s119, 1
        %s451 = smul.addr %s450, 8
        %s452 = scalar_lea.vmem [#allocation8], %s451
        // Predicated region
        $region49: #{tpu_custom_call.1} parent=35 // pred_check
          %p453 = pneg %p129
        $region50: #{tpu_custom_call.1} parent=35 // pred_check_branch
          %455 = sbr.rel (%p453) target = $region52
        $region51: #{tpu_custom_call.1} parent=35 // pred_region
          %s457 = ssub.s32 128, 128
          %458 = vsyncadd %s449, %s457
          %s459 = smul.addr %s22, 128
          %s460 = scalar_lea.hbm %s4, %s459
          %s462 = sshll.u32 %s452, 4
          %s463 = int_to_ptr.vmem [resolvable:$true] %s462
          %465 = dma.vmem_to_hbm [thread:$0]  %s463, 128, %s460, %s449
        $region52: #{tpu_custom_call.1} parent=35 // pred_fallthru
          _
      $region36: #{tpu_custom_call.1} parent=5 // pred_fallthru
        _
      %p466 = scmp.le.s32.totalorder 2, %s17
      // Predicated region
      $region53: #{tpu_custom_call.1} parent=5 // pred_check
        %p467 = pneg %p466
      $region54: #{tpu_custom_call.1} parent=5 // pred_check_branch
        %469 = sbr.rel (%p467) target = $region56
      $region55: #{tpu_custom_call.1} parent=5 // pred_region
        %s470 = ssub.s32 %s17, 2
        // Predicated region
        $region57: #{tpu_custom_call.1} parent=55 // pred_check
          %p471 = pneg %p135
        $region58: #{tpu_custom_call.1} parent=55 // pred_check_branch
          %473 = sbr.rel (%p471) target = $region60
        $region59: #{tpu_custom_call.1} parent=55 // pred_region
          %s474 = sand.u32 %s120, 1
          %s475 = scalar_lea.sflag [#allocation4], %s474
          %s476 = sand.u32 %s120, 1
          %s477 = smul.addr %s476, 8
          %s478 = scalar_lea.vmem [#allocation8], %s477
          %479 = dma.done %s475, 128
        $region60: #{tpu_custom_call.1} parent=55 // pred_fallthru
          _
      $region56: #{tpu_custom_call.1} parent=5 // pred_fallthru
        _
    $region6: #{tpu_custom_call.1} parent=1 // loop_footer
      %s21 = sadd.s32 1, %s17
    $region7: #{tpu_custom_call.1} parent=1 // loop_footer_branch
      %16 = sbr.rel target = $region3
    $region8: #{tpu_custom_call.1} parent=1 // loop_exit
      _
    %480 = vsyncpa [#allocation3], 1
    %s481 = scalar_lea.sflag [#allocation3], 1
    %482 = vsyncpa %s481, 1
    %483 = vsyncpa [#allocation6], 1
    %484 = vsyncpa [#allocation4], 1
    %s485 = scalar_lea.sflag [#allocation4], 1
    %486 = vsyncpa %s485, 1

// kernel: tpu_custom_call.1
$region0: #{tpu_custom_call.1}
  #allocation0 [shape = 'u32[]', space=smem, size = 0x4, offset = 0x4, fixed_abs, tag = 'smem constant byte address 0x4 - core index']
  #allocation1 [shape = 'u32[144,128]{1,0:T(1,128)}', space=vmem, size = 0x12000, scoped, tag = 'internal scratch']
  %s0 = inlined_call_operand.hbm [shape: f32[16,32], index: 0, kind: input, shape index: {}]
  %s1 = inlined_call_operand.hbm [shape: bf16[32,128], index: 1, kind: input, shape index: {}]
  %s2 = inlined_call_operand.hbm [shape: bf16[128,128], index: 2, kind: input, shape index: {}]
  %s3 = inlined_call_operand.vmem [shape: f32[4,128], index: 3, kind: input, shape index: {}]
  %s4 = inlined_call_operand.hbm [shape: f32[16,128], index: 4, kind: output, shape index: {}]
  %s5 = sld [smem:[#allocation0]]
  $region61: #{tpu_custom_call.1} parent=0
    _
  %s7 = ssub.s32 1, %s5
  %s8 = scalar_select 0, %s7, %s5
  $region1: #{tpu_custom_call.1} parent=0
    #allocation2 [shape = 'u8[8192]{0}', space=vmem, size = 0x2000, scoped, tag = 'input window, operand 0']
    #allocation3 [shape = 's32[2]{0}', space=sflag, size = 0x8, scoped, tag = 'scoped memory for tpu_custom_call.1']
    #allocation4 [shape = 's32[2]{0}', space=sflag, size = 0x8, scoped, tag = 'scoped memory for tpu_custom_call.1']
    #allocation5 [shape = 'u8[8192]{0}', space=vmem, size = 0x2000, scoped, tag = 'input window, operand 1, single buffered']
    #allocation6 [shape = 's32[1]{0}', space=sflag, size = 0x4, scoped, tag = 'scoped memory for tpu_custom_call.1']
    #allocation7 [shape = 'u8[32768]{0}', space=vmem, size = 0x8000, scoped, tag = 'input window, operand 2, single buffered']
    #allocation8 [shape = 'u8[8192]{0}', space=vmem, size = 0x2000, scoped, tag = 'output window, operand 0']
    %9 = vsyncpa [#allocation3], 0
    %s10 = scalar_lea.sflag [#allocation3], 1
    %11 = vsyncpa %s10, 0
    %12 = vsyncpa [#allocation6], 0
    %13 = vsyncpa [#allocation4], 0
    %s14 = scalar_lea.sflag [#allocation4], 1
    %15 = vsyncpa %s14, 0
    loop: start=0, step=1, limit=4
    $region2: #{tpu_custom_call.1} parent=1 // loop_pre_header
      _
    $region3: #{tpu_custom_call.1} parent=1 // loop_header
      %s17 = sphi 0, %s21
      %p18 = scmp.ge.s32.totalorder %s17, 4
      %s27 = sphi 0, %s29
      %s30 = sphi 0, %s27
      %s31 = sphi 0, %s30
      %s47 = sphi 0, %s31
      %s51 = sphi 0, %s51
      %s53 = sphi 0, %s51
      %s54 = sphi 0, %s53
      %s68 = sphi 0, %s54
      %s72 = sphi 0, %s72
      %s74 = sphi 0, %s72
      %s75 = sphi 0, %s74
      %s89 = sphi 0, %s75
      %s93 = sphi 0, %s93
      %s95 = sphi 0, %s93
      %s96 = sphi 0, %s95
      %s110 = sphi 0, %s96
      %s116 = sphi 0, %s118
      %s119 = sphi 0, %s116
      %s120 = sphi 0, %s119
      %s136 = sphi 0, %s120
    $region4: #{tpu_custom_call.1} parent=1 // loop_header_branch
      %20 = sbr.rel (%p18) target = $region8
    $region5: #{tpu_custom_call.1} parent=1 // loop_body
      %s22 = ssub.s32 %s17, 1
      %s23 = ssub.s32 %s17, 2
      %s24 = sadd.s32 %s17, 1
      %s25 = ssub.s32 %s17, %s24
      %p26 = scmp.eq.s32.totalorder %s25, 0
      %s28 = sadd.s32 %s27, 1
      %s29 = scalar_select %p26, %s27, %s28
      %p32 = pneg %p26
      %p33 = scmp.eq.s32.totalorder %s17, 1
      %p34 = por %p32, %p33
      %p35 = scmp.ne.s32.totalorder %s27, %s30
      %p36 = scmp.eq.s32.totalorder %s17, 0
      %p37 = por %p35, %p36
      %p38 = scmp.ne.s32.totalorder %s27, %s30
      %p39 = scmp.eq.s32.totalorder %s22, 1
      %p40 = por %p38, %p39
      %p41 = scmp.ne.s32.totalorder %s30, %s31
      %p42 = scmp.eq.s32.totalorder %s22, 0
      %p43 = por %p41, %p42
      %p44 = scmp.ne.s32.totalorder %s30, %s31
      %p45 = scmp.eq.s32.totalorder %s23, 1
      %p46 = por %p44, %p45
      %p48 = scmp.ne.s32.totalorder %s31, %s47
      %p49 = scmp.eq.s32.totalorder %s23, 0
      %p50 = por %p48, %p49
      %s52 = sadd.s32 %s51, 1
      %p55 = scmp.eq.s32.totalorder %s17, 1
      %p56 = scmp.ne.s32.totalorder %s51, %s53
      %p57 = scmp.eq.s32.totalorder %s17, 0
      %p58 = por %p56, %p57
      %p59 = scmp.ne.s32.totalorder %s51, %s53
      %p60 = scmp.eq.s32.totalorder %s22, 1
      %p61 = por %p59, %p60
      %p62 = scmp.ne.s32.totalorder %s53, %s54
      %p63 = scmp.eq.s32.totalorder %s22, 0
      %p64 = por %p62, %p63
      %p65 = scmp.ne.s32.totalorder %s53, %s54
      %p66 = scmp.eq.s32.totalorder %s23, 1
      %p67 = por %p65, %p66
      %p69 = scmp.ne.s32.totalorder %s54, %s68
      %p70 = scmp.eq.s32.totalorder %s23, 0
      %p71 = por %p69, %p70
      %s73 = sadd.s32 %s72, 1
      %p76 = scmp.eq.s32.totalorder %s17, 1
      %p77 = scmp.ne.s32.totalorder %s72, %s74
      %p78 = scmp.eq.s32.totalorder %s17, 0
      %p79 = por %p77, %p78
      %p80 = scmp.ne.s32.totalorder %s72, %s74
      %p81 = scmp.eq.s32.totalorder %s22, 1
      %p82 = por %p80, %p81
      %p83 = scmp.ne.s32.totalorder %s74, %s75
      %p84 = scmp.eq.s32.totalorder %s22, 0
      %p85 = por %p83, %p84
      %p86 = scmp.ne.s32.totalorder %s74, %s75
      %p87 = scmp.eq.s32.totalorder %s23, 1
      %p88 = por %p86, %p87
      %p90 = scmp.ne.s32.totalorder %s75, %s89
      %p91 = scmp.eq.s32.totalorder %s23, 0
      %p92 = por %p90, %p91
      %s94 = sadd.s32 %s93, 1
      %p97 = scmp.eq.s32.totalorder %s17, 1
      %p98 = scmp.ne.s32.totalorder %s93, %s95
      %p99 = scmp.eq.s32.totalorder %s17, 0
      %p100 = por %p98, %p99
      %p101 = scmp.ne.s32.totalorder %s93, %s95
      %p102 = scmp.eq.s32.totalorder %s22, 1
      %p103 = por %p101, %p102
      %p104 = scmp.ne.s32.totalorder %s95, %s96
      %p105 = scmp.eq.s32.totalorder %s22, 0
      %p106 = por %p104, %p105
      %p107 = scmp.ne.s32.totalorder %s95, %s96
      %p108 = scmp.eq.s32.totalorder %s23, 1
      %p109 = por %p107, %p108
      %p111 = scmp.ne.s32.totalorder %s96, %s110
      %p112 = scmp.eq.s32.totalorder %s23, 0
      %p113 = por %p111, %p112
      %s114 = ssub.s32 %s17, %s24
      %p115 = scmp.eq.s32.totalorder %s114, 0
      %s117 = sadd.s32 %s116, 1
      %s118 = scalar_select %p115, %s116, %s117
      %p121 = pneg %p115
      %p122 = scmp.eq.s32.totalorder %s17, 1
      %p123 = por %p121, %p122
      %p124 = scmp.ne.s32.totalorder %s116, %s119
      %p125 = scmp.eq.s32.totalorder %s17, 0
      %p126 = por %p124, %p125
      %p127 = scmp.ne.s32.totalorder %s116, %s119
      %p128 = scmp.eq.s32.totalorder %s22, 1
      %p129 = por %p127, %p128
      %p130 = scmp.ne.s32.totalorder %s119, %s120
      %p131 = scmp.eq.s32.totalorder %s22, 0
      %p132 = por %p130, %p131
      %p133 = scmp.ne.s32.totalorder %s119, %s120
      %p134 = scmp.eq.s32.totalorder %s23, 1
      %p135 = por %p133, %p134
      %p137 = scmp.ne.s32.totalorder %s120, %s136
      %p138 = scmp.eq.s32.totalorder %s23, 0
      %p139 = por %p137, %p138
      %p140 = scmp.le.s32.totalorder 1, %s17
      %p141 = scmp.lt.s32.totalorder %s17, 3
      %p142 = pnand %p140, %p141
      %p143 = pneg %p142
      // Predicated region
      $region9: #{tpu_custom_call.1} parent=5 // pred_check
        _
      $region10: #{tpu_custom_call.1} parent=5 // pred_check_branch
        %145 = sbr.rel (%p142) target = $region12
      $region11: #{tpu_custom_call.1} parent=5 // pred_region
        %s146 = ssub.s32 %s17, 1
        // Predicated region
        $region13: #{tpu_custom_call.1} parent=11 // pred_check
          %p147 = pneg %p64
        $region14: #{tpu_custom_call.1} parent=11 // pred_check_branch
          %149 = sbr.rel (%p147) target = $region16
        $region15: #{tpu_custom_call.1} parent=11 // pred_region
          %s151 = ssub.s32 256, 256
          %152 = vsyncadd [#allocation6], %s151
          %s153 = sshll.u32 [#allocation5], 4
          %s154 = int_to_ptr.vmem [resolvable:$true] %s153
          %159 = dma.hbm_to_vmem [thread:$0]  %s1, 256, %s154, [#allocation6], 64, 64, 4
        $region16: #{tpu_custom_call.1} parent=11 // pred_fallthru
          _
        // Predicated region
        $region17: #{tpu_custom_call.1} parent=11 // pred_check
          %p160 = pneg %p85
        $region18: #{tpu_custom_call.1} parent=11 // pred_check_branch
          %162 = sbr.rel (%p160) target = $region20
        $region19: #{tpu_custom_call.1} parent=11 // pred_region
          %s164 = ssub.s32 1024, 1024
          %165 = vsyncadd [#allocation6], %s164
          %s166 = sshll.u32 [#allocation7], 4
          %s167 = int_to_ptr.vmem [resolvable:$true] %s166
          %172 = dma.hbm_to_vmem [thread:$0]  %s2, 1024, %s167, [#allocation6], 64, 64, 4
        $region20: #{tpu_custom_call.1} parent=11 // pred_fallthru
          _
        // Predicated region
        $region21: #{tpu_custom_call.1} parent=11 // pred_check
          %p173 = pneg %p106
        $region22: #{tpu_custom_call.1} parent=11 // pred_check_branch
          %175 = sbr.rel (%p173) target = $region24
        $region23: #{tpu_custom_call.1} parent=11 // pred_region
          _
        $region24: #{tpu_custom_call.1} parent=11 // pred_fallthru
          _
      $region12: #{tpu_custom_call.1} parent=5 // pred_fallthru
        _
      %p176 = scmp.lt.s32.totalorder %s17, 2
      // Predicated region
      $region25: #{tpu_custom_call.1} parent=5 // pred_check
        %p177 = pneg %p176
      $region26: #{tpu_custom_call.1} parent=5 // pred_check_branch
        %179 = sbr.rel (%p177) target = $region28
      $region27: #{tpu_custom_call.1} parent=5 // pred_region
        // Predicated region
        $region29: #{tpu_custom_call.1} parent=27 // pred_check
          %p180 = pneg %p37
        $region30: #{tpu_custom_call.1} parent=27 // pred_check_branch
          %182 = sbr.rel (%p180) target = $region32
        $region31: #{tpu_custom_call.1} parent=27 // pred_region
          %s183 = sand.u32 %s27, 1
          %s184 = scalar_lea.sflag [#allocation3], %s183
          %s185 = sand.u32 %s27, 1
          %s186 = smul.addr %s185, 8
          %s187 = scalar_lea.vmem [#allocation2], %s186
          %s189 = ssub.s32 128, 128
          %190 = vsyncadd %s184, %s189
          %s191 = smul.addr %s17, 128
          %s192 = scalar_lea.hbm %s0, %s191
          %s194 = sshll.u32 %s187, 4
          %s195 = int_to_ptr.vmem [resolvable:$true] %s194
          %197 = dma.hbm_to_vmem [thread:$0]  %s192, 128, %s195, %s184
        $region32: #{tpu_custom_call.1} parent=27 // pred_fallthru
          _
      $region28: #{tpu_custom_call.1} parent=5 // pred_fallthru
        _
      %p198 = scmp.le.s32.totalorder 1, %s17
      %p199 = scmp.lt.s32.totalorder %s17, 3
      %p200 = pnand %p198, %p199
      %p201 = pneg %p200
      // Predicated region
      $region33: #{tpu_custom_call.1} parent=5 // pred_check
        _
      $region34: #{tpu_custom_call.1} parent=5 // pred_check_branch
        %203 = sbr.rel (%p200) target = $region36
      $region35: #{tpu_custom_call.1} parent=5 // pred_region
        %s204 = ssub.s32 %s17, 1
        %s205 = sand.u32 %s30, 1
        %s206 = scalar_lea.sflag [#allocation3], %s205
        %s207 = sand.u32 %s30, 1
        %s208 = smul.addr %s207, 8
        %s209 = scalar_lea.vmem [#allocation2], %s208
        // Predicated region
        $region37: #{tpu_custom_call.1} parent=35 // pred_check
          %p210 = pneg %p43
        $region38: #{tpu_custom_call.1} parent=35 // pred_check_branch
          %212 = sbr.rel (%p210) target = $region40
        $region39: #{tpu_custom_call.1} parent=35 // pred_region
          %213 = dma.done %s206, 128
        $region40: #{tpu_custom_call.1} parent=35 // pred_fallthru
          _
        // Predicated region
        $region41: #{tpu_custom_call.1} parent=35 // pred_check
          %p214 = pneg %p64
        $region42: #{tpu_custom_call.1} parent=35 // pred_check_branch
          %216 = sbr.rel (%p214) target = $region44
        $region43: #{tpu_custom_call.1} parent=35 // pred_region
          %217 = dma.done [#allocation6], 256
        $region44: #{tpu_custom_call.1} parent=35 // pred_fallthru
          _
        // Predicated region
        $region45: #{tpu_custom_call.1} parent=35 // pred_check
          %p218 = pneg %p85
        $region46: #{tpu_custom_call.1} parent=35 // pred_check_branch
          %220 = sbr.rel (%p218) target = $region48
        $region47: #{tpu_custom_call.1} parent=35 // pred_region
          %221 = dma.done [#allocation6], 1024
        $region48: #{tpu_custom_call.1} parent=35 // pred_fallthru
          _
        %s222 = sand.u32 %s30, 1
        %s223 = scalar_lea.sflag [#allocation3], %s222
        %s224 = sand.u32 %s30, 1
        %s225 = smul.addr %s224, 8
        %s226 = scalar_lea.vmem [#allocation2], %s225
        %p227 = pneg %p43
        %p228 = pneg %p40
        %p229 = pneg %p64
        %p230 = pneg %p61
        %p231 = pneg %p85
        %p232 = pneg %p82
        %p233 = pneg %p106
        %p234 = pneg %p103
        %p235 = pneg %p132
        %p236 = pneg %p129
        %s237 = sand.u32 %s119, 1
        %s238 = scalar_lea.sflag [#allocation4], %s237
        %s239 = sand.u32 %s119, 1
        %s240 = smul.addr %s239, 8
        %s241 = scalar_lea.vmem [#allocation8], %s240
        %v243 = vld [vmem:[%s209] sm:$0xff]
        %v244 = vpack.c.bf16 %v243, %v243
        %v245 = vld [vmem:[%s3] sm:$0x1]
        %v246 = vld [vmem:[%s3 + $0x1] sm:$0x1]
        %v247 = vld [vmem:[#allocation5] sm:$0xf]
        %v248 = vld [vmem:[#allocation5 + $0x4] sm:$0xf]
        %v249 = vld [vmem:[#allocation5 + $0x8] sm:$0xf]
        %v250 = vld [vmem:[#allocation5 + $0xc] sm:$0xf]
        %v251 = vlaneseq
        %v252 = vshrl.u32 %v251, 7
        %v253 = vsub.s32 0, %v252
        %v254 = vrot.slane %v245, %v253
        %v259 = vunpack.c.l.b16 %v247
        %v260 = vunpack.c.l.b16 %v248
        %v261 = vunpack.c.l.b16 %v249
        %v262 = vunpack.c.l.b16 %v250
        %v263 = vpack.c.b16 %v260, %v259
        %v264 = vpack.c.b16 %v262, %v261
        %vm267 = vcmask 261120
        %v269 = vsel %vm267, %v244, 0
        %271 = vmatprep.subr.bf16.mxu0 0
        %272 = vmatpush1.bf16.msra.mxu0 0
        %273 = vmatprep.subr.bf16.mxu0 0
        %274 = vmatpush1.bf16.msra.mxu0 0
        %275 = vmatprep.subr.bf16.mxu0 0
        %276 = vmatpush1.bf16.msra.mxu0 0
        %277 = vmatprep.subr.bf16.mxu0 0
        %278 = vmatpush1.bf16.msra.mxu0 0
        %279 = vmatprep.subr.bf16.mxu0 0
        %280 = vmatpush1.bf16.msra.mxu0 0
        %281 = vmatprep.subr.bf16.mxu0 0
        %282 = vmatpush1.bf16.msra.mxu0 0
        %283 = vmatprep.subr.bf16.mxu0 0
        %284 = vmatpush1.bf16.msra.mxu0 %v264
        %285 = vmatprep.subr.bf16.mxu0 0
        %286 = vmatpush1.bf16.msra.mxu0 %v263
        %287 = vmatprep.subr.bf16.mxu0 0
        %288 = vmatpush2.bf16.msra.mxu0 0
        %289 = vmatprep.subr.bf16.mxu0 0
        %290 = vmatpush2.bf16.msra.mxu0 0
        %291 = vmatprep.subr.bf16.mxu0 0
        %292 = vmatpush2.bf16.msra.mxu0 0
        %293 = vmatprep.subr.bf16.mxu0 0
        %294 = vmatpush2.bf16.msra.mxu0 0
        %295 = vmatprep.subr.bf16.mxu0 0
        %296 = vmatpush2.bf16.msra.mxu0 0
        %297 = vmatprep.subr.bf16.mxu0 0
        %298 = vmatpush2.bf16.msra.mxu0 0
        %299 = vmatprep.subr.bf16.mxu0 0
        %300 = vmatpush2.bf16.msra.mxu0 0
        %301 = vmatprep.subr.bf16.mxu0 0
        %302 = vmatpush2.bf16.msra.mxu0 0
        %303 = vmatprep.mubr.bf16.mxu0 0
        %304 = vmatmul.mubr.bf16.gmra.mxu0 %v269
        %v305 = vpop.f32.mrf.mxu0
        %v306 = vadd.f32 %v254, %v305
        %v307 = vpop.f32.mrf.mxu0
        %v308 = vpop.f32.mrf.mxu0
        %v309 = vpop.f32.mrf.mxu0
        %310 = vdwg.mxu0
        %v311 = vmax.f32 %v306, 0.0
        %v312 = vpack.c.bf16 %v311, %v311
        %v313 = vld [vmem:[#allocation7] sm:$0xf]
        %v314 = vld [vmem:[#allocation7 + $0x4] sm:$0xf]
        %v315 = vld [vmem:[#allocation7 + $0x8] sm:$0xf]
        %v316 = vld [vmem:[#allocation7 + $0xc] sm:$0xf]
        %v317 = vld [vmem:[#allocation7 + $0x10] sm:$0xf]
        %v318 = vld [vmem:[#allocation7 + $0x14] sm:$0xf]
        %v319 = vld [vmem:[#allocation7 + $0x18] sm:$0xf]
        %v320 = vld [vmem:[#allocation7 + $0x1c] sm:$0xf]
        %v321 = vld [vmem:[#allocation7 + $0x20] sm:$0xf]
        %v322 = vld [vmem:[#allocation7 + $0x24] sm:$0xf]
        %v323 = vld [vmem:[#allocation7 + $0x28] sm:$0xf]
        %v324 = vld [vmem:[#allocation7 + $0x2c] sm:$0xf]
        %v325 = vld [vmem:[#allocation7 + $0x30] sm:$0xf]
        %v326 = vld [vmem:[#allocation7 + $0x34] sm:$0xf]
        %v327 = vld [vmem:[#allocation7 + $0x38] sm:$0xf]
        %v328 = vld [vmem:[#allocation7 + $0x3c] sm:$0xf]
        %v329 = vlaneseq
        %v330 = vshrl.u32 %v329, 7
        %v331 = vsub.s32 0, %v330
        %v332 = vrot.slane %v246, %v331
        %v349 = vunpack.c.l.b16 %v313
        %v350 = vunpack.c.l.b16 %v314
        %v351 = vunpack.c.l.b16 %v315
        %v352 = vunpack.c.l.b16 %v316
        %v353 = vunpack.c.l.b16 %v317
        %v354 = vunpack.c.l.b16 %v318
        %v355 = vunpack.c.l.b16 %v319
        %v356 = vunpack.c.l.b16 %v320
        %v357 = vunpack.c.l.b16 %v321
        %v358 = vunpack.c.l.b16 %v322
        %v359 = vunpack.c.l.b16 %v323
        %v360 = vunpack.c.l.b16 %v324
        %v361 = vunpack.c.l.b16 %v325
        %v362 = vunpack.c.l.b16 %v326
        %v363 = vunpack.c.l.b16 %v327
        %v364 = vunpack.c.l.b16 %v328
        %v365 = vpack.c.b16 %v350, %v349
        %v366 = vpack.c.b16 %v352, %v351
        %v367 = vpack.c.b16 %v354, %v353
        %v368 = vpack.c.b16 %v356, %v355
        %v369 = vpack.c.b16 %v358, %v357
        %v370 = vpack.c.b16 %v360, %v359
        %v371 = vpack.c.b16 %v362, %v361
        %v372 = vpack.c.b16 %v364, %v363
        %381 = vmatprep.subr.bf16.mxu0 0
        %382 = vmatpush1.bf16.msra.mxu0 %v372
        %383 = vmatprep.subr.bf16.mxu0 0
        %384 = vmatpush1.bf16.msra.mxu0 %v371
        %385 = vmatprep.subr.bf16.mxu0 0
        %386 = vmatpush1.bf16.msra.mxu0 %v370
        %387 = vmatprep.subr.bf16.mxu0 0
        %388 = vmatpush1.bf16.msra.mxu0 %v369
        %389 = vmatprep.subr.bf16.mxu0 0
        %390 = vmatpush1.bf16.msra.mxu0 %v368
        %391 = vmatprep.subr.bf16.mxu0 0
        %392 = vmatpush1.bf16.msra.mxu0 %v367
        %393 = vmatprep.subr.bf16.mxu0 0
        %394 = vmatpush1.bf16.msra.mxu0 %v366
        %395 = vmatprep.subr.bf16.mxu0 0
        %396 = vmatpush1.bf16.msra.mxu0 %v365
        %397 = vmatprep.subr.bf16.mxu0 0
        %398 = vmatpush2.bf16.msra.mxu0 0
        %399 = vmatprep.subr.bf16.mxu0 0
        %400 = vmatpush2.bf16.msra.mxu0 0
        %401 = vmatprep.subr.bf16.mxu0 0
        %402 = vmatpush2.bf16.msra.mxu0 0
        %403 = vmatprep.subr.bf16.mxu0 0
        %404 = vmatpush2.bf16.msra.mxu0 0
        %405 = vmatprep.subr.bf16.mxu0 0
        %406 = vmatpush2.bf16.msra.mxu0 0
        %407 = vmatprep.subr.bf16.mxu0 0
        %408 = vmatpush2.bf16.msra.mxu0 0
        %409 = vmatprep.subr.bf16.mxu0 0
        %410 = vmatpush2.bf16.msra.mxu0 0
        %411 = vmatprep.subr.bf16.mxu0 0
        %412 = vmatpush2.bf16.msra.mxu0 0
        %413 = vmatprep.mubr.bf16.mxu0 0
        %414 = vmatmul.mubr.bf16.gmra.mxu0 %v312
        %v415 = vpop.f32.mrf.mxu0
        %v416 = vadd.f32 %v332, %v415
        %v417 = vpop.f32.mrf.mxu0
        %v418 = vpop.f32.mrf.mxu0
        %v419 = vpop.f32.mrf.mxu0
        %420 = vdwg.mxu0
        %v421 = vld [vmem:[%s3 + $0x2] sm:$0x1]
        %v422 = vld [vmem:[%s3 + $0x3] sm:$0x1]
        %423 = vadd.xlane.f32.xlu0 %v416
        %v424 = vpop.xlane.xlu0 %423
        %v425 = vmul.f32 %v416, %v416
        %426 = vadd.xlane.f32.xlu0 %v425
        %v427 = vpop.xlane.xlu0 %426
        %v428 = vmul.f32 %v424, 0.0078125
        %v429 = vmul.f32 %v427, 0.0078125
        %v430 = vmul.f32 %v428, %v428
        %v431 = vsub.f32 %v429, %v430
        %v432 = vmax.f32 %v431, 0.0
        %v433 = vsub.f32 %v416, %v428
        %v434 = vadd.f32 %v432, 1e-05
        %v435 = vrsqrt.pop %v434
        %v436 = vmul.f32 %v433, %v435
        %v437 = vlaneseq
        %v438 = vshrl.u32 %v437, 7
        %v439 = vsub.s32 0, %v438
        %v440 = vrot.slane %v421, %v439
        %v441 = vmul.f32 %v436, %v440
        %v442 = vlaneseq
        %v443 = vshrl.u32 %v442, 7
        %v444 = vsub.s32 0, %v443
        %v445 = vrot.slane %v422, %v444
        %v446 = vadd.f32 %v441, %v445
        %447 = vst [vmem:[%s241] sm:$0xff] %v446
        %s448 = sand.u32 %s119, 1
        %s449 = scalar_lea.sflag [#allocation4], %s448
        %s450 = sand.u32 %s119, 1
        %s451 = smul.addr %s450, 8
        %s452 = scalar_lea.vmem [#allocation8], %s451
        // Predicated region
        $region49: #{tpu_custom_call.1} parent=35 // pred_check
          %p453 = pneg %p129
        $region50: #{tpu_custom_call.1} parent=35 // pred_check_branch
          %455 = sbr.rel (%p453) target = $region52
        $region51: #{tpu_custom_call.1} parent=35 // pred_region
          %s457 = ssub.s32 128, 128
          %458 = vsyncadd %s449, %s457
          %s459 = smul.addr %s22, 128
          %s460 = scalar_lea.hbm %s4, %s459
          %s462 = sshll.u32 %s452, 4
          %s463 = int_to_ptr.vmem [resolvable:$true] %s462
          %465 = dma.vmem_to_hbm [thread:$0]  %s463, 128, %s460, %s449
        $region52: #{tpu_custom_call.1} parent=35 // pred_fallthru
          _
      $region36: #{tpu_custom_call.1} parent=5 // pred_fallthru
        _
      %p466 = scmp.le.s32.totalorder 2, %s17
      // Predicated region
      $region53: #{tpu_custom_call.1} parent=5 // pred_check
        %p467 = pneg %p466
      $region54: #{tpu_custom_call.1} parent=5 // pred_check_branch
        %469 = sbr.rel (%p467) target = $region56
      $region55: #{tpu_custom_call.1} parent=5 // pred_region
        %s470 = ssub.s32 %s17, 2
        // Predicated region
        $region57: #{tpu_custom_call.1} parent=55 // pred_check
          %p471 = pneg %p135
        $region58: #{tpu_custom_call.1} parent=55 // pred_check_branch
          %473 = sbr.rel (%p471) target = $region60
        $region59: #{tpu_custom_call.1} parent=55 // pred_region
          %s474 = sand.u32 %s120, 1
          %s475 = scalar_lea.sflag [#allocation4], %s474
          %s476 = sand.u32 %s120, 1
          %s477 = smul.addr %s476, 8
          %s478 = scalar_lea.vmem [#allocation8], %s477
          %479 = dma.done %s475, 128
        $region60: #{tpu_custom_call.1} parent=55 // pred_fallthru
          _
      $region56: #{tpu_custom_call.1} parent=5 // pred_fallthru
        _
    $region6: #{tpu_custom_call.1} parent=1 // loop_footer
      %s21 = sadd.s32 1, %s17
    $region7: #{tpu_custom_call.1} parent=1 // loop_footer_branch
      %16 = sbr.rel target = $region3
    $region8: #{tpu_custom_call.1} parent=1 // loop_exit
      _
    %480 = vsyncpa [#allocation3], 1
    %s481 = scalar_lea.sflag [#allocation3], 1
    %482 = vsyncpa %s481, 1
    %483 = vsyncpa [#allocation6], 1
    %484 = vsyncpa [#allocation4], 1
    %s485 = scalar_lea.sflag [#allocation4], 1
    %486 = vsyncpa %s485, 1

</llo_original>
